<compile_context>
chip_gen: v6e
topology: v6e:2x2x1
jax: 0.10.0
libtpu: 0.0.40
codegen_flags: <defaults>
</compile_context>

<pallas_src>
import jax
import jax.numpy as jnp
from jax.experimental import pallas as pl
from jax.experimental.pallas import tpu as pltpu


def _round_up(x, m):
    return (x + m - 1) // m * m


def make_fused_params(params, dtype=jnp.bfloat16):
    """Fold eval-BN + the linear feature stub into two (weight, bias) pairs.

    Call ONCE and reuse (hoisted out of the forward path): at real DINOv2 sizes
    the w_feat @ w1 fusion is itself a large matmul. Hidden / output widths are
    zero-padded to multiples of 128 so the kernel sees lane-dense operands and
    unmasked stores. Returns (fused_dict, true_output_dim).
    """
    eps = 1e-5
    s1 = params["bn1_gamma"] / jnp.sqrt(params["bn1_var"] + eps)
    t1 = params["bn1_beta"] - params["bn1_mean"] * s1
    s2 = params["bn2_gamma"] / jnp.sqrt(params["bn2_var"] + eps)
    t2 = params["bn2_beta"] - params["bn2_mean"] * s2

    # TODO(synk): wf @ w1 pre-fusion is only valid while the backbone is this
    # linear stub; drop it when a real (nonlinear) DINOv2 backbone is substituted.
    w1f = jnp.dot(params["w_feat"], params["w1"]) * s1[None, :]      # (Din, H1)
    b1f = params["b1"] * s1[None, :] + t1[None, :]                   # (1, H1)
    w2f = params["w2"] * s2[None, :]                                 # (H1, E2)
    b2f = params["b2"] * s2[None, :] + t2[None, :]                   # (1, E2)

    H1, E2 = w1f.shape[1], w2f.shape[1]
    H1p, E2p = _round_up(H1, 128), _round_up(E2, 128)
    # Zero padding is exact: padded h columns are relu(0 + 0) = 0 and padded w2
    # rows are 0, so they contribute nothing to the (padded) outputs.
    w1f = jnp.pad(w1f, ((0, 0), (0, H1p - H1)))
    b1f = jnp.pad(b1f, ((0, 0), (0, H1p - H1)))
    w2f = jnp.pad(w2f, ((0, H1p - H1), (0, E2p - E2)))
    b2f = jnp.pad(b2f, ((0, 0), (0, E2p - E2)))

    fused = {
        "w1": w1f.astype(dtype),
        "b1": b1f.astype(jnp.float32),
        "w2": w2f.astype(dtype),
        "b2": b2f.astype(jnp.float32),
    }
    return fused, E2


def _encoder_kernel(x_ref, w1_ref, b1_ref, w2_ref, b2_ref, o_ref, acc_ref):
    k = pl.program_id(1)

    @pl.when(k == 0)
    def _():
        acc_ref[...] = jnp.zeros_like(acc_ref)

    # Input streams HBM->VMEM as f32; cast to bf16 on the VPU here (halves the
    # HBM input traffic vs a wrapper-side astype pass, which re-reads the copy).
    x = x_ref[...].astype(w1_ref.dtype)
    # Fused (feature-stub -> fc1): bf16 MXU matmul, f32 accumulation over K tiles.
    acc_ref[...] += jnp.dot(x, w1_ref[...], preferred_element_type=jnp.float32)

    @pl.when(k == pl.num_programs(1) - 1)
    def _():
        # Fused bn1 scale/shift already folded into weights/bias; ReLU; dropout
        # (eval) == identity.  Fused (fc2 -> bn2) second matmul + bias.
        h = jnp.maximum(acc_ref[...] + b1_ref[...], 0.0)
        y = jnp.dot(h.astype(w2_ref.dtype), w2_ref[...],
                    preferred_element_type=jnp.float32)
        o_ref[...] = (y + b2_ref[...]).astype(o_ref.dtype)


def _pick_row_tile(n_rows, row_tile):
    if n_rows % 8 != 0:
        # Full-extent row block (exempt from the 8-divisibility rule): avoids any
        # pad copy, at the cost of a single row grid step.  Edge case only.
        return n_rows
    # Keep >= 2 row steps when possible so the "parallel" axis can shard across
    # both TensorCores on v7x (costs nothing on single-TC v5e/v6e).
    return max(8, min(row_tile, _round_up(pl.cdiv(n_rows, 2), 8)))


def _pick_k_tile(din, k_tile):
    if din <= k_tile:
        return din
    # Largest multiple of 128 <= k_tile that divides Din exactly.  The K axis must
    # not be ragged: garbage K columns would contaminate the accumulator.
    start = min(k_tile, din) // 128 * 128
    for tk in range(start, 0, -128):
        if din % tk == 0:
            return tk
    # TODO(synk): fall back to a zero-padded Din when no aligned divisor exists.
    return din


def _vmem_bytes(tm, tk, h1p, e2p, k_steps):
    w1_bufs = 1 if k_steps == 1 else 2        # w1 block index varies only with k
    return (2 * tm * tk * 4                   # f32 input tile, double-buffered
            + w1_bufs * tk * h1p * 2          # bf16 fused fc1 weight tile
            + h1p * 4 + e2p * 4               # single-buffered biases
            + h1p * e2p * 2                   # single-buffered fused fc2 weight
            + 2 * tm * e2p * 4                # f32 output tile, double-buffered
            + tm * h1p * 4)                   # f32 accumulator scratch


def res_cnn_encoder_forward(x_3d, fused, *, out_dim=None, row_tile=512, k_tile=512):
    """x_3d: (B, T, C, H, W) float32.  Returns (B, T, out_dim) float32."""
    B, T, C, H, W = x_3d.shape
    Din = C * H * W
    w1f, b1f, w2f, b2f = fused["w1"], fused["b1"], fused["w2"], fused["b2"]
    H1p, E2p = w1f.shape[1], w2f.shape[1]
    out_dim = E2p if out_dim is None else out_dim

    # (B, T, C, H, W) -> (B*T, Din): contiguous reshape, stays f32, no HBM copy
    # and no pad copy (bf16 cast happens inside the kernel).
    n_rows = B * T
    x2d = x_3d.reshape(n_rows, Din)

    tk = _pick_k_tile(Din, k_tile)
    k_steps = Din // tk
    tm = _pick_row_tile(n_rows, row_tile)
    # Shrink the row tile until the explicit buffer plan fits a v7x-safe budget
    # (64 MiB physical VMEM per TensorCore there; 128 MiB on v5e/v6e).
    budget = 48 * 1024 * 1024
    while n_rows % 8 == 0 and tm > 8 and _vmem_bytes(tm, tk, H1p, E2p, k_steps) > budget:
        tm = max(8, _round_up(tm // 2, 8))
    row_steps = pl.cdiv(n_rows, tm)
    vmem_limit = min(
        max(int(_vmem_bytes(tm, tk, H1p, E2p, k_steps) * 1.25) + (4 << 20), 16 << 20),
        64 << 20)

    const = lambda i, k: (0, 0)        # resident operands: same block every step
    single = pl.Buffered(1)            # constant block index -> no double buffering
    if k_steps == 1:
        w1_spec = pl.BlockSpec((tk, H1p), const, pipeline_mode=single)
    else:
        w1_spec = pl.BlockSpec((tk, H1p), lambda i, k: (k, 0))

    # Ragged last row tile (when tm does not divide n_rows) is handled by Pallas
    # partial-block masking; rows are independent so no contamination.
    out2d = pl.pallas_call(
        _encoder_kernel,
        out_shape=jax.ShapeDtypeStruct((n_rows, E2p), jnp.float32),
        grid_spec=pltpu.PrefetchScalarGridSpec(
            num_scalar_prefetch=0,
            grid=(row_steps, k_steps),
            in_specs=[
                pl.BlockSpec((tm, tk), lambda i, k: (i, k)),           # f32 frame rows
                w1_spec,                                               # fused stub+fc1+bn1 W
                pl.BlockSpec((1, H1p), const, pipeline_mode=single),   # fused fc1+bn1 bias
                pl.BlockSpec((H1p, E2p), const, pipeline_mode=single), # fused fc2+bn2 W
                pl.BlockSpec((1, E2p), const, pipeline_mode=single),   # fused fc2+bn2 bias
            ],
            out_specs=pl.BlockSpec((tm, E2p), lambda i, k: (i, 0)),
            scratch_shapes=[pltpu.VMEM((tm, H1p), jnp.float32)],
        ),
        compiler_params=pltpu.CompilerParams(
            dimension_semantics=("parallel", "arbitrary"),
            vmem_limit_bytes=vmem_limit),
    )(x2d, w1f, b1f, w2f, b2f)

    if out_dim != E2p:
        out2d = out2d[:, :out_dim]
    # (B*T, out) -> (B, T, out): contiguous reshape, matches torch stack+transpose.
    return out2d.reshape(B, T, out_dim)


def _kernel_mirror_reference(x_3d, fused, out_dim):
    """Mirrors the kernel math exactly (bf16 matmul operands, f32 accumulation)."""
    B, T, C, H, W = x_3d.shape
    x2d = x_3d.reshape(B * T, C * H * W).astype(jnp.bfloat16)
    h = jnp.dot(x2d, fused["w1"], preferred_element_type=jnp.float32) + fused["b1"]
    h = jnp.maximum(h, 0.0)
    y = jnp.dot(h.astype(jnp.bfloat16), fused["w2"],
                preferred_element_type=jnp.float32) + fused["b2"]
    return y[:, :out_dim].reshape(B, T, out_dim)


def _reference_forward(x_3d, params):
    """Pure-f32 reference with the original per-timestep PyTorch structure."""
    B, T, C, H, W = x_3d.shape
    Din = C * H * W
    eps = 1e-5
    s1 = params["bn1_gamma"] / jnp.sqrt(params["bn1_var"] + eps)
    t1 = params["bn1_beta"] - params["bn1_mean"] * s1
    s2 = params["bn2_gamma"] / jnp.sqrt(params["bn2_var"] + eps)
    t2 = params["bn2_beta"] - params["bn2_mean"] * s2
    outs = []
    for t in range(T):
        x = x_3d[:, t].reshape(B, Din)
        f = x @ params["w_feat"]
        h = f @ params["w1"] + params["b1"]
        h = h * s1 + t1
        h = jnp.maximum(h, 0.0)
        y = h @ params["w2"] + params["b2"]
        y = y * s2 + t2
        outs.append(y)
    return jnp.stack(outs, axis=0).transpose(1, 0, 2)


def make_params(key, Din, embed_dim, fc_hidden1, cnn_embed_dim):
    ks = jax.random.split(key, 5)
    return {
        "w_feat": jax.random.normal(ks[0], (Din, embed_dim), jnp.float32) * 0.02,
        "w1": jax.random.normal(ks[1], (embed_dim, fc_hidden1), jnp.float32) * 0.05,
        "b1": jax.random.normal(ks[2], (1, fc_hidden1), jnp.float32) * 0.01,
        "w2": jax.random.normal(ks[3], (fc_hidden1, cnn_embed_dim), jnp.float32) * 0.05,
        "b2": jax.random.normal(ks[4], (1, cnn_embed_dim), jnp.float32) * 0.01,
        # BatchNorm running stats / affine (deterministic, non-trivial values)
        "bn1_gamma": jnp.linspace(0.5, 1.5, fc_hidden1, dtype=jnp.float32),
        "bn1_beta": jnp.linspace(-0.1, 0.1, fc_hidden1, dtype=jnp.float32),
        "bn1_mean": jnp.linspace(-0.2, 0.2, fc_hidden1, dtype=jnp.float32),
        "bn1_var": jnp.linspace(0.8, 1.2, fc_hidden1, dtype=jnp.float32),
        "bn2_gamma": jnp.linspace(0.9, 1.1, cnn_embed_dim, dtype=jnp.float32),
        "bn2_beta": jnp.linspace(0.0, 0.2, cnn_embed_dim, dtype=jnp.float32),
        "bn2_mean": jnp.linspace(-0.1, 0.1, cnn_embed_dim, dtype=jnp.float32),
        "bn2_var": jnp.linspace(0.9, 1.3, cnn_embed_dim, dtype=jnp.float32),
    }


if __name__ == "__main__":
    # Small, deterministic example shapes.
    B, T, C, H, W = 2, 8, 4, 16, 16
    embed_dim = 128        # stands in for DINOv2 embed_dim
    fc_hidden1 = 128
    cnn_embed_dim = 128
    Din = C * H * W

    key = jax.random.PRNGKey(0)
    kx, kp = jax.random.split(key)
    x_3d = jax.random.normal(kx, (B, T, C, H, W), jnp.float32)
    params = make_params(kp, Din, embed_dim, fc_hidden1, cnn_embed_dim)

    # Hoisted: fold the linear stub + eval-BN into fused weights ONCE (not per call).
    fused, e2 = make_fused_params(params)

    fwd = jax.jit(res_cnn_encoder_forward, static_argnames=("out_dim",))
    out = jax.block_until_ready(fwd(x_3d, fused, out_dim=e2))
    assert out.shape == (B, T, cnn_embed_dim), out.shape

    # Tight check against an exact mirror of the kernel math (same bf16 operands,
    # f32 accumulation): validates the Pallas kernel itself.
    mirror = _kernel_mirror_reference(x_3d, fused, e2)
    assert jnp.allclose(out, mirror, rtol=1e-3, atol=1e-3), "mismatch vs kernel mirror"

    # Semantic check against the pure-f32 per-timestep reference (original module
    # structure); tolerance accounts for bf16 rounding of the matmul operands.
    ref = _reference_forward(x_3d, params)
    assert jnp.allclose(out, ref, rtol=5e-2, atol=5e-2), "mismatch vs f32 reference"

    print("KERNEL_OK")
</pallas_src>

<mosaic_0001>
module attributes {stable_mosaic.version = 11 : i64} {
  func.func @_encoder_kernel(%arg0: i32, %arg1: i32, %arg2: memref<8x512xf32, #tpu.memory_space<vmem>>, %arg3: memref<512x128xbf16, #tpu.memory_space<vmem>>, %arg4: memref<1x128xf32, #tpu.memory_space<vmem>>, %arg5: memref<128x128xbf16, #tpu.memory_space<vmem>>, %arg6: memref<1x128xf32, #tpu.memory_space<vmem>>, %arg7: memref<8x128xf32, #tpu.memory_space<vmem>>, %arg8: memref<8x128xf32, #tpu.memory_space<vmem>>) attributes {dimension_semantics = [#tpu.dimension_semantics<parallel>, #tpu.dimension_semantics<arbitrary>], iteration_bounds = array<i64: 2, 2>, scalar_prefetch = 0 : i64, scratch_operands = 1 : i64, tpu.core_type = #tpu.core_type<tc>, window_params = [{transform_indices = @transform_0, window_bounds = array<i64: 8, 512>}, {transform_indices = @transform_1, window_bounds = array<i64: 512, 128>}, {pipeline_mode = #tpu.pipeline_mode<synchronous>, transform_indices = @transform_2, window_bounds = array<i64: 1, 128>}, {pipeline_mode = #tpu.pipeline_mode<synchronous>, transform_indices = @transform_3, window_bounds = array<i64: 128, 128>}, {pipeline_mode = #tpu.pipeline_mode<synchronous>, transform_indices = @transform_4, window_bounds = array<i64: 1, 128>}, {transform_indices = @transform_5, window_bounds = array<i64: 8, 128>}]} {
    %c0_i32 = arith.constant 0 : i32
    %0 = arith.cmpi eq, %arg1, %c0_i32 : i32
    %1 = arith.extui %0 : i1 to i32
    %c0_i32_0 = arith.constant 0 : i32
    %2 = arith.cmpi ne, %1, %c0_i32_0 : i32
    scf.if %2 {
      %cst_9 = arith.constant 0.000000e+00 : f32
      %13 = vector.broadcast %cst_9 : f32 to vector<8x128xf32>
      %c0_10 = arith.constant 0 : index
      %c0_11 = arith.constant 0 : index
      %14 = vector.load %arg8[%c0_10, %c0_11] : memref<8x128xf32, #tpu.memory_space<vmem>>, vector<8x128xf32>
      tpu.vector_store %arg8[%c0_10, %c0_11], %13 {strides = array<i32>} : memref<8x128xf32, #tpu.memory_space<vmem>>, vector<8x128xf32>,
    } else {
    }
    %c0 = arith.constant 0 : index
    %c0_1 = arith.constant 0 : index
    %3 = vector.load %arg2[%c0, %c0_1] : memref<8x512xf32, #tpu.memory_space<vmem>>, vector<8x512xf32>
    %4 = arith.truncf %3 : vector<8x512xf32> to vector<8x512xbf16>
    %c0_2 = arith.constant 0 : index
    %c0_3 = arith.constant 0 : index
    %5 = vector.load %arg8[%c0_2, %c0_3] : memref<8x128xf32, #tpu.memory_space<vmem>>, vector<8x128xf32>
    %c0_4 = arith.constant 0 : index
    %c0_5 = arith.constant 0 : index
    %6 = vector.load %arg3[%c0_4, %c0_5] : memref<512x128xbf16, #tpu.memory_space<vmem>>, vector<512x128xbf16>
    %cst = arith.constant dense<0.000000e+00> : vector<8x128xf32>
    %7 = tpu.matmul %4, %6, %cst {dimension_numbers = #tpu.dot_dimension_numbers<[1], [0], [0], [1], [0, 0, 1, 1], [], []>} : vector<8x512xbf16>, vector<512x128xbf16>, vector<8x128xf32> -> vector<8x128xf32>
    %8 = arith.addf %5, %7 : vector<8x128xf32>
    %c0_6 = arith.constant 0 : index
    %c0_7 = arith.constant 0 : index
    %9 = vector.load %arg8[%c0_6, %c0_7] : memref<8x128xf32, #tpu.memory_space<vmem>>, vector<8x128xf32>
    tpu.vector_store %arg8[%c0_6, %c0_7], %8 {strides = array<i32>} : memref<8x128xf32, #tpu.memory_space<vmem>>, vector<8x128xf32>,
    %c1_i32 = arith.constant 1 : i32
    %10 = arith.cmpi eq, %arg1, %c1_i32 : i32
    %11 = arith.extui %10 : i1 to i32
    %c0_i32_8 = arith.constant 0 : i32
    %12 = arith.cmpi ne, %11, %c0_i32_8 : i32
    scf.if %12 {
      %c0_9 = arith.constant 0 : index
      %c0_10 = arith.constant 0 : index
      %13 = vector.load %arg8[%c0_9, %c0_10] : memref<8x128xf32, #tpu.memory_space<vmem>>, vector<8x128xf32>
      %c0_11 = arith.constant 0 : index
      %c0_12 = arith.constant 0 : index
      %14 = vector.load %arg4[%c0_11, %c0_12] : memref<1x128xf32, #tpu.memory_space<vmem>>, vector<1x128xf32>
      %15 = vector.broadcast %14 : vector<1x128xf32> to vector<8x128xf32>
      %16 = arith.addf %13, %15 : vector<8x128xf32>
      %cst_13 = arith.constant 0.000000e+00 : f32
      %17 = vector.broadcast %cst_13 : f32 to vector<8x128xf32>
      %18 = arith.maximumf %16, %17 : vector<8x128xf32>
      %19 = arith.truncf %18 : vector<8x128xf32> to vector<8x128xbf16>
      %c0_14 = arith.constant 0 : index
      %c0_15 = arith.constant 0 : index
      %20 = vector.load %arg5[%c0_14, %c0_15] : memref<128x128xbf16, #tpu.memory_space<vmem>>, vector<128x128xbf16>
      %cst_16 = arith.constant dense<0.000000e+00> : vector<8x128xf32>
      %21 = tpu.matmul %19, %20, %cst_16 {dimension_numbers = #tpu.dot_dimension_numbers<[1], [0], [0], [1], [0, 0, 1, 1], [], []>} : vector<8x128xbf16>, vector<128x128xbf16>, vector<8x128xf32> -> vector<8x128xf32>
      %c0_17 = arith.constant 0 : index
      %c0_18 = arith.constant 0 : index
      %22 = vector.load %arg6[%c0_17, %c0_18] : memref<1x128xf32, #tpu.memory_space<vmem>>, vector<1x128xf32>
      %23 = vector.broadcast %22 : vector<1x128xf32> to vector<8x128xf32>
      %24 = arith.addf %21, %23 : vector<8x128xf32>
      %c0_19 = arith.constant 0 : index
      %c0_20 = arith.constant 0 : index
      %25 = vector.load %arg7[%c0_19, %c0_20] : memref<8x128xf32, #tpu.memory_space<vmem>>, vector<8x128xf32>
      tpu.vector_store %arg7[%c0_19, %c0_20], %24 {strides = array<i32>} : memref<8x128xf32, #tpu.memory_space<vmem>>, vector<8x128xf32>,
    } else {
    }
    return
  }
  func.func @transform_0(%arg0: i32, %arg1: i32) -> (i32, i32) {
    %c0_i32 = arith.constant 0 : i32
    return %arg0, %arg1 : i32, i32
  }
  func.func @transform_1(%arg0: i32, %arg1: i32) -> (i32, i32) {
    %c0_i32 = arith.constant 0 : i32
    %c0_i32_0 = arith.constant 0 : i32
    return %arg1, %c0_i32 : i32, i32
  }
  func.func @transform_2(%arg0: i32, %arg1: i32) -> (i32, i32) {
    %c0_i32 = arith.constant 0 : i32
    %c0_i32_0 = arith.constant 0 : i32
    %c0_i32_1 = arith.constant 0 : i32
    return %c0_i32, %c0_i32_0 : i32, i32
  }
  func.func @transform_3(%arg0: i32, %arg1: i32) -> (i32, i32) {
    %c0_i32 = arith.constant 0 : i32
    %c0_i32_0 = arith.constant 0 : i32
    %c0_i32_1 = arith.constant 0 : i32
    return %c0_i32, %c0_i32_0 : i32, i32
  }
  func.func @transform_4(%arg0: i32, %arg1: i32) -> (i32, i32) {
    %c0_i32 = arith.constant 0 : i32
    %c0_i32_0 = arith.constant 0 : i32
    %c0_i32_1 = arith.constant 0 : i32
    return %c0_i32, %c0_i32_0 : i32, i32
  }
  func.func @transform_5(%arg0: i32, %arg1: i32) -> (i32, i32) {
    %c0_i32 = arith.constant 0 : i32
    %c0_i32_0 = arith.constant 0 : i32
    return %arg0, %c0_i32 : i32, i32
  }
}

</mosaic_0001>

<llo_original>
// kernel: res_cnn_encoder_forward.1
$region0: #{res_cnn_encoder_forward.1}
  #allocation0 [shape = 'u32[]', space=smem, size = 0x4, offset = 0x4, fixed_abs, tag = 'smem constant byte address 0x4 - core index']
  #allocation1 [shape = 'u32[144,128]{1,0:T(1,128)}', space=vmem, size = 0x12000, scoped, tag = 'internal scratch']
  #allocation2 [shape = 'f32[8,128]{1,0:T(8,128)}', space=vmem, size = 0x1000, scoped, tag = 'scratch operand']
  %s0 = inlined_call_operand.vmem [shape: f32[16,1024], index: 0, kind: input, shape index: {}]
  %s1 = inlined_call_operand.vmem [shape: bf16[1024,128], index: 1, kind: input, shape index: {}]
  %s2 = inlined_call_operand.vmem [shape: f32[1,128], index: 2, kind: input, shape index: {}]
  %s3 = inlined_call_operand.vmem [shape: bf16[128,128], index: 3, kind: input, shape index: {}]
  %s4 = inlined_call_operand.vmem [shape: f32[1,128], index: 4, kind: input, shape index: {}]
  %s5 = inlined_call_operand.hbm [shape: f32[16,128], index: 5, kind: output, shape index: {}]
  %s6 = sld [smem:[#allocation0]]
  $region61: #{res_cnn_encoder_forward.1} parent=0
    _
  %s8 = ssub.s32 1, %s6
  %s9 = scalar_select 0, %s8, %s6
  $region1: #{res_cnn_encoder_forward.1} parent=0
    #allocation3 [shape = 'u8[8192]{0}', space=vmem, size = 0x2000, scoped, tag = 'output window, operand 0']
    #allocation4 [shape = 's32[2]{0}', space=sflag, size = 0x8, scoped, tag = 'scoped memory for res_cnn_encoder_forward.1']
    %10 = vsyncpa [#allocation4], 0
    %s11 = scalar_lea.sflag [#allocation4], 1
    %12 = vsyncpa %s11, 0
    loop: start=0, step=1, limit=6
    $region2: #{res_cnn_encoder_forward.1} parent=1 // loop_pre_header
      _
    $region3: #{res_cnn_encoder_forward.1} parent=1 // loop_header
      %s14 = sphi 0, %s18
      %p15 = scmp.ge.s32.totalorder %s14, 6
      %s21 = sphi 0, %s33
      %s22 = sphi 0, %s29
      %s23 = sphi 0, %s21
      %s24 = sphi 0, %s22
      %s25 = sphi 0, %s23
      %s26 = sphi 0, %s24
      %s38 = sphi 0, %s40
      %s41 = sphi 0, %s38
      %s42 = sphi 0, %s41
      %s58 = sphi 0, %s42
      %s64 = sphi 0, %s66
      %s67 = sphi 0, %s64
      %s68 = sphi 0, %s67
      %s84 = sphi 0, %s68
      %s88 = sphi 0, %s88
      %s90 = sphi 0, %s88
      %s91 = sphi 0, %s90
      %s105 = sphi 0, %s91
      %s109 = sphi 0, %s109
      %s111 = sphi 0, %s109
      %s112 = sphi 0, %s111
      %s126 = sphi 0, %s112
      %s130 = sphi 0, %s130
      %s132 = sphi 0, %s130
      %s133 = sphi 0, %s132
      %s147 = sphi 0, %s133
      %s153 = sphi 0, %s155
      %s156 = sphi 0, %s153
      %s157 = sphi 0, %s156
      %s173 = sphi 0, %s157
    $region4: #{res_cnn_encoder_forward.1} parent=1 // loop_header_branch
      %17 = sbr.rel (%p15) target = $region8
    $region5: #{res_cnn_encoder_forward.1} parent=1 // loop_body
      %s19 = ssub.s32 %s14, 1
      %s20 = ssub.s32 %s14, 2
      %s27 = sadd.s32 1, %s22
      %p28 = scmp.ge.s32.totalorder %s27, 2
      %s29 = scalar_select %p28, 0, %s27
      %s30 = sadd.s32 1, %s21
      %s31 = scalar_select %p28, %s30, %s21
      %p32 = scmp.ge.s32.totalorder %s31, 2
      %s33 = scalar_select %p32, 0, %s31
      %s34 = ssub.s32 %s21, %s33
      %s35 = ssub.s32 %s22, %s29
      %s36 = sor.u32 %s34, %s35
      %p37 = scmp.eq.s32.totalorder %s36, 0
      %s39 = sadd.s32 %s38, 1
      %s40 = scalar_select %p37, %s38, %s39
      %p43 = pneg %p37
      %p44 = scmp.eq.s32.totalorder %s14, 3
      %p45 = por %p43, %p44
      %p46 = scmp.ne.s32.totalorder %s38, %s41
      %p47 = scmp.eq.s32.totalorder %s14, 0
      %p48 = por %p46, %p47
      %p49 = scmp.ne.s32.totalorder %s38, %s41
      %p50 = scmp.eq.s32.totalorder %s19, 3
      %p51 = por %p49, %p50
      %p52 = scmp.ne.s32.totalorder %s41, %s42
      %p53 = scmp.eq.s32.totalorder %s19, 0
      %p54 = por %p52, %p53
      %p55 = scmp.ne.s32.totalorder %s41, %s42
      %p56 = scmp.eq.s32.totalorder %s20, 3
      %p57 = por %p55, %p56
      %p59 = scmp.ne.s32.totalorder %s42, %s58
      %p60 = scmp.eq.s32.totalorder %s20, 0
      %p61 = por %p59, %p60
      %s62 = ssub.s32 %s22, %s29
      %p63 = scmp.eq.s32.totalorder %s62, 0
      %s65 = sadd.s32 %s64, 1
      %s66 = scalar_select %p63, %s64, %s65
      %p69 = pneg %p63
      %p70 = scmp.eq.s32.totalorder %s14, 3
      %p71 = por %p69, %p70
      %p72 = scmp.ne.s32.totalorder %s64, %s67
      %p73 = scmp.eq.s32.totalorder %s14, 0
      %p74 = por %p72, %p73
      %p75 = scmp.ne.s32.totalorder %s64, %s67
      %p76 = scmp.eq.s32.totalorder %s19, 3
      %p77 = por %p75, %p76
      %p78 = scmp.ne.s32.totalorder %s67, %s68
      %p79 = scmp.eq.s32.totalorder %s19, 0
      %p80 = por %p78, %p79
      %p81 = scmp.ne.s32.totalorder %s67, %s68
      %p82 = scmp.eq.s32.totalorder %s20, 3
      %p83 = por %p81, %p82
      %p85 = scmp.ne.s32.totalorder %s68, %s84
      %p86 = scmp.eq.s32.totalorder %s20, 0
      %p87 = por %p85, %p86
      %s89 = sadd.s32 %s88, 1
      %p92 = scmp.eq.s32.totalorder %s14, 3
      %p93 = scmp.ne.s32.totalorder %s88, %s90
      %p94 = scmp.eq.s32.totalorder %s14, 0
      %p95 = por %p93, %p94
      %p96 = scmp.ne.s32.totalorder %s88, %s90
      %p97 = scmp.eq.s32.totalorder %s19, 3
      %p98 = por %p96, %p97
      %p99 = scmp.ne.s32.totalorder %s90, %s91
      %p100 = scmp.eq.s32.totalorder %s19, 0
      %p101 = por %p99, %p100
      %p102 = scmp.ne.s32.totalorder %s90, %s91
      %p103 = scmp.eq.s32.totalorder %s20, 3
      %p104 = por %p102, %p103
      %p106 = scmp.ne.s32.totalorder %s91, %s105
      %p107 = scmp.eq.s32.totalorder %s20, 0
      %p108 = por %p106, %p107
      %s110 = sadd.s32 %s109, 1
      %p113 = scmp.eq.s32.totalorder %s14, 3
      %p114 = scmp.ne.s32.totalorder %s109, %s111
      %p115 = scmp.eq.s32.totalorder %s14, 0
      %p116 = por %p114, %p115
      %p117 = scmp.ne.s32.totalorder %s109, %s111
      %p118 = scmp.eq.s32.totalorder %s19, 3
      %p119 = por %p117, %p118
      %p120 = scmp.ne.s32.totalorder %s111, %s112
      %p121 = scmp.eq.s32.totalorder %s19, 0
      %p122 = por %p120, %p121
      %p123 = scmp.ne.s32.totalorder %s111, %s112
      %p124 = scmp.eq.s32.totalorder %s20, 3
      %p125 = por %p123, %p124
      %p127 = scmp.ne.s32.totalorder %s112, %s126
      %p128 = scmp.eq.s32.totalorder %s20, 0
      %p129 = por %p127, %p128
      %s131 = sadd.s32 %s130, 1
      %p134 = scmp.eq.s32.totalorder %s14, 3
      %p135 = scmp.ne.s32.totalorder %s130, %s132
      %p136 = scmp.eq.s32.totalorder %s14, 0
      %p137 = por %p135, %p136
      %p138 = scmp.ne.s32.totalorder %s130, %s132
      %p139 = scmp.eq.s32.totalorder %s19, 3
      %p140 = por %p138, %p139
      %p141 = scmp.ne.s32.totalorder %s132, %s133
      %p142 = scmp.eq.s32.totalorder %s19, 0
      %p143 = por %p141, %p142
      %p144 = scmp.ne.s32.totalorder %s132, %s133
      %p145 = scmp.eq.s32.totalorder %s20, 3
      %p146 = por %p144, %p145
      %p148 = scmp.ne.s32.totalorder %s133, %s147
      %p149 = scmp.eq.s32.totalorder %s20, 0
      %p150 = por %p148, %p149
      %s151 = ssub.s32 %s21, %s33
      %p152 = scmp.eq.s32.totalorder %s151, 0
      %s154 = sadd.s32 %s153, 1
      %s155 = scalar_select %p152, %s153, %s154
      %p158 = pneg %p152
      %p159 = scmp.eq.s32.totalorder %s14, 3
      %p160 = por %p158, %p159
      %p161 = scmp.ne.s32.totalorder %s153, %s156
      %p162 = scmp.eq.s32.totalorder %s14, 0
      %p163 = por %p161, %p162
      %p164 = scmp.ne.s32.totalorder %s153, %s156
      %p165 = scmp.eq.s32.totalorder %s19, 3
      %p166 = por %p164, %p165
      %p167 = scmp.ne.s32.totalorder %s156, %s157
      %p168 = scmp.eq.s32.totalorder %s19, 0
      %p169 = por %p167, %p168
      %p170 = scmp.ne.s32.totalorder %s156, %s157
      %p171 = scmp.eq.s32.totalorder %s20, 3
      %p172 = por %p170, %p171
      %p174 = scmp.ne.s32.totalorder %s157, %s173
      %p175 = scmp.eq.s32.totalorder %s20, 0
      %p176 = por %p174, %p175
      %p177 = scmp.le.s32.totalorder 1, %s14
      %p178 = scmp.lt.s32.totalorder %s14, 5
      %p179 = pnand %p177, %p178
      %p180 = pneg %p179
      // Predicated region
      $region9: #{res_cnn_encoder_forward.1} parent=5 // pred_check
        _
      $region10: #{res_cnn_encoder_forward.1} parent=5 // pred_check_branch
        %182 = sbr.rel (%p179) target = $region12
      $region11: #{res_cnn_encoder_forward.1} parent=5 // pred_region
        %s183 = ssub.s32 %s14, 1
        // Predicated region
        $region13: #{res_cnn_encoder_forward.1} parent=11 // pred_check
          %p184 = pneg %p101
        $region14: #{res_cnn_encoder_forward.1} parent=11 // pred_check_branch
          %186 = sbr.rel (%p184) target = $region16
        $region15: #{res_cnn_encoder_forward.1} parent=11 // pred_region
          _
        $region16: #{res_cnn_encoder_forward.1} parent=11 // pred_fallthru
          _
        // Predicated region
        $region17: #{res_cnn_encoder_forward.1} parent=11 // pred_check
          %p187 = pneg %p122
        $region18: #{res_cnn_encoder_forward.1} parent=11 // pred_check_branch
          %189 = sbr.rel (%p187) target = $region20
        $region19: #{res_cnn_encoder_forward.1} parent=11 // pred_region
          _
        $region20: #{res_cnn_encoder_forward.1} parent=11 // pred_fallthru
          _
        // Predicated region
        $region21: #{res_cnn_encoder_forward.1} parent=11 // pred_check
          %p190 = pneg %p143
        $region22: #{res_cnn_encoder_forward.1} parent=11 // pred_check_branch
          %192 = sbr.rel (%p190) target = $region24
        $region23: #{res_cnn_encoder_forward.1} parent=11 // pred_region
          _
        $region24: #{res_cnn_encoder_forward.1} parent=11 // pred_fallthru
          _
      $region12: #{res_cnn_encoder_forward.1} parent=5 // pred_fallthru
        _
      %p193 = scmp.lt.s32.totalorder %s14, 4
      // Predicated region
      $region25: #{res_cnn_encoder_forward.1} parent=5 // pred_check
        %p194 = pneg %p193
      $region26: #{res_cnn_encoder_forward.1} parent=5 // pred_check_branch
        %196 = sbr.rel (%p194) target = $region28
      $region27: #{res_cnn_encoder_forward.1} parent=5 // pred_region
        // Predicated region
        $region29: #{res_cnn_encoder_forward.1} parent=27 // pred_check
          %p197 = pneg %p48
        $region30: #{res_cnn_encoder_forward.1} parent=27 // pred_check_branch
          %199 = sbr.rel (%p197) target = $region32
        $region31: #{res_cnn_encoder_forward.1} parent=27 // pred_region
          %s200 = smul.u32 4, %s22
          %p201 = scmp.lt.s32.totalorder %s21, 1
          %s202 = scalar_select %p201, %s21, 1
          %p203 = scmp.lt.s32.totalorder %s200, 7
          %s204 = scalar_select %p203, %s200, 7
          %s205 = smul.addr %s202, 8
          %s206 = sadd.s32 %s204, %s205
          %s207 = smul.addr %s206, 8
          %s208 = scalar_lea.vmem %s0, %s207
          %s209 = smul.u32 4, %s22
        $region32: #{res_cnn_encoder_forward.1} parent=27 // pred_fallthru
          _
        // Predicated region
        $region33: #{res_cnn_encoder_forward.1} parent=27 // pred_check
          %p210 = pneg %p74
        $region34: #{res_cnn_encoder_forward.1} parent=27 // pred_check_branch
          %212 = sbr.rel (%p210) target = $region36
        $region35: #{res_cnn_encoder_forward.1} parent=27 // pred_region
          %s213 = smul.u32 64, %s22
          %p214 = scmp.lt.s32.totalorder %s213, 127
          %s215 = scalar_select %p214, %s213, 127
          %s216 = smul.addr %s215, 4
          %s217 = scalar_lea.vmem %s1, %s216
          %s218 = smul.u32 64, %s22
        $region36: #{res_cnn_encoder_forward.1} parent=27 // pred_fallthru
          _
      $region28: #{res_cnn_encoder_forward.1} parent=5 // pred_fallthru
        _
      %p219 = scmp.le.s32.totalorder 1, %s14
      %p220 = scmp.lt.s32.totalorder %s14, 5
      %p221 = pnand %p219, %p220
      %p222 = pneg %p221
      // Predicated region
      $region37: #{res_cnn_encoder_forward.1} parent=5 // pred_check
        _
      $region38: #{res_cnn_encoder_forward.1} parent=5 // pred_check_branch
        %224 = sbr.rel (%p221) target = $region40
      $region39: #{res_cnn_encoder_forward.1} parent=5 // pred_region
        %s225 = ssub.s32 %s14, 1
        %s226 = smul.u32 4, %s24
        %p227 = scmp.lt.s32.totalorder %s23, 1
        %s228 = scalar_select %p227, %s23, 1
        %p229 = scmp.lt.s32.totalorder %s226, 7
        %s230 = scalar_select %p229, %s226, 7
        %s231 = smul.addr %s228, 8
        %s232 = sadd.s32 %s230, %s231
        %s233 = smul.addr %s232, 8
        %s234 = scalar_lea.vmem %s0, %s233
        %p235 = pneg %p54
        %p236 = pneg %p51
        %s237 = smul.u32 64, %s24
        %p238 = scmp.lt.s32.totalorder %s237, 127
        %s239 = scalar_select %p238, %s237, 127
        %s240 = smul.addr %s239, 4
        %s241 = scalar_lea.vmem %s1, %s240
        %p242 = pneg %p80
        %p243 = pneg %p77
        %p244 = pneg %p101
        %p245 = pneg %p98
        %p246 = pneg %p122
        %p247 = pneg %p119
        %p248 = pneg %p143
        %p249 = pneg %p140
        %p250 = pneg %p169
        %p251 = pneg %p166
        %s252 = sand.u32 %s156, 1
        %s253 = scalar_lea.sflag [#allocation4], %s252
        %s254 = sand.u32 %s156, 1
        %s255 = smul.addr %s254, 8
        %s256 = scalar_lea.vmem [#allocation3], %s255
        %s257 = smul.u32 4, %s24
        %p258 = scmp.lt.s32.totalorder %s23, 1
        %s259 = scalar_select %p258, %s23, 1
        %p260 = scmp.lt.s32.totalorder %s257, 7
        %s261 = scalar_select %p260, %s257, 7
        %s262 = smul.addr %s259, 8
        %s263 = sadd.s32 %s261, %s262
        %s264 = smul.addr %s263, 8
        %s265 = scalar_lea.vmem %s0, %s264
        %s266 = smul.u32 4, %s24
        %s267 = smul.u32 64, %s24
        %p268 = scmp.lt.s32.totalorder %s267, 127
        %s269 = scalar_select %p268, %s267, 127
        %s270 = smul.addr %s269, 4
        %s271 = scalar_lea.vmem %s1, %s270
        %s272 = smul.u32 64, %s24
        %p274 = scmp.eq.s32.totalorder %s24, 0
        // Predicated region
        $region41: #{res_cnn_encoder_forward.1} parent=39 // pred_check
          %p275 = pneg %p274
        $region42: #{res_cnn_encoder_forward.1} parent=39 // pred_check_branch
          %277 = sbr.rel (%p275) target = $region44
        $region43: #{res_cnn_encoder_forward.1} parent=39 // pred_region
          %278 = vst [vmem:[#allocation2] sm:$0xff] 0.0
        $region44: #{res_cnn_encoder_forward.1} parent=39 // pred_fallthru
          _
        %v279 = vld [vmem:[%s265] sm:$0xff]
        %v280 = vld [vmem:[%s265 + $0x8] sm:$0xff]
        %v281 = vld [vmem:[%s265 + $0x10] sm:$0xff]
        %v282 = vld [vmem:[%s265 + $0x18] sm:$0xff]
        %v283 = vpack.c.bf16 %v279, %v279
        %v284 = vpack.c.bf16 %v280, %v280
        %v285 = vpack.c.bf16 %v281, %v281
        %v286 = vpack.c.bf16 %v282, %v282
        %v287 = vld [vmem:[#allocation2] sm:$0xff]
        %v288 = vld [vmem:[%s271] sm:$0xf]
        %v289 = vld [vmem:[%s271 + $0x4] sm:$0xf]
        %v290 = vld [vmem:[%s271 + $0x8] sm:$0xf]
        %v291 = vld [vmem:[%s271 + $0xc] sm:$0xf]
        %v292 = vld [vmem:[%s271 + $0x10] sm:$0xf]
        %v293 = vld [vmem:[%s271 + $0x14] sm:$0xf]
        %v294 = vld [vmem:[%s271 + $0x18] sm:$0xf]
        %v295 = vld [vmem:[%s271 + $0x1c] sm:$0xf]
        %v296 = vld [vmem:[%s271 + $0x20] sm:$0xf]
        %v297 = vld [vmem:[%s271 + $0x24] sm:$0xf]
        %v298 = vld [vmem:[%s271 + $0x28] sm:$0xf]
        %v299 = vld [vmem:[%s271 + $0x2c] sm:$0xf]
        %v300 = vld [vmem:[%s271 + $0x30] sm:$0xf]
        %v301 = vld [vmem:[%s271 + $0x34] sm:$0xf]
        %v302 = vld [vmem:[%s271 + $0x38] sm:$0xf]
        %v303 = vld [vmem:[%s271 + $0x3c] sm:$0xf]
        %v304 = vld [vmem:[%s271 + $0x40] sm:$0xf]
        %v305 = vld [vmem:[%s271 + $0x44] sm:$0xf]
        %v306 = vld [vmem:[%s271 + $0x48] sm:$0xf]
        %v307 = vld [vmem:[%s271 + $0x4c] sm:$0xf]
        %v308 = vld [vmem:[%s271 + $0x50] sm:$0xf]
        %v309 = vld [vmem:[%s271 + $0x54] sm:$0xf]
        %v310 = vld [vmem:[%s271 + $0x58] sm:$0xf]
        %v311 = vld [vmem:[%s271 + $0x5c] sm:$0xf]
        %v312 = vld [vmem:[%s271 + $0x60] sm:$0xf]
        %v313 = vld [vmem:[%s271 + $0x64] sm:$0xf]
        %v314 = vld [vmem:[%s271 + $0x68] sm:$0xf]
        %v315 = vld [vmem:[%s271 + $0x6c] sm:$0xf]
        %v316 = vld [vmem:[%s271 + $0x70] sm:$0xf]
        %v317 = vld [vmem:[%s271 + $0x74] sm:$0xf]
        %v318 = vld [vmem:[%s271 + $0x78] sm:$0xf]
        %v319 = vld [vmem:[%s271 + $0x7c] sm:$0xf]
        %v320 = vld [vmem:[%s271 + $0x80] sm:$0xf]
        %v321 = vld [vmem:[%s271 + $0x84] sm:$0xf]
        %v322 = vld [vmem:[%s271 + $0x88] sm:$0xf]
        %v323 = vld [vmem:[%s271 + $0x8c] sm:$0xf]
        %v324 = vld [vmem:[%s271 + $0x90] sm:$0xf]
        %v325 = vld [vmem:[%s271 + $0x94] sm:$0xf]
        %v326 = vld [vmem:[%s271 + $0x98] sm:$0xf]
        %v327 = vld [vmem:[%s271 + $0x9c] sm:$0xf]
        %v328 = vld [vmem:[%s271 + $0xa0] sm:$0xf]
        %v329 = vld [vmem:[%s271 + $0xa4] sm:$0xf]
        %v330 = vld [vmem:[%s271 + $0xa8] sm:$0xf]
        %v331 = vld [vmem:[%s271 + $0xac] sm:$0xf]
        %v332 = vld [vmem:[%s271 + $0xb0] sm:$0xf]
        %v333 = vld [vmem:[%s271 + $0xb4] sm:$0xf]
        %v334 = vld [vmem:[%s271 + $0xb8] sm:$0xf]
        %v335 = vld [vmem:[%s271 + $0xbc] sm:$0xf]
        %v336 = vld [vmem:[%s271 + $0xc0] sm:$0xf]
        %v337 = vld [vmem:[%s271 + $0xc4] sm:$0xf]
        %v338 = vld [vmem:[%s271 + $0xc8] sm:$0xf]
        %v339 = vld [vmem:[%s271 + $0xcc] sm:$0xf]
        %v340 = vld [vmem:[%s271 + $0xd0] sm:$0xf]
        %v341 = vld [vmem:[%s271 + $0xd4] sm:$0xf]
        %v342 = vld [vmem:[%s271 + $0xd8] sm:$0xf]
        %v343 = vld [vmem:[%s271 + $0xdc] sm:$0xf]
        %v344 = vld [vmem:[%s271 + $0xe0] sm:$0xf]
        %v345 = vld [vmem:[%s271 + $0xe4] sm:$0xf]
        %v346 = vld [vmem:[%s271 + $0xe8] sm:$0xf]
        %v347 = vld [vmem:[%s271 + $0xec] sm:$0xf]
        %v348 = vld [vmem:[%s271 + $0xf0] sm:$0xf]
        %v349 = vld [vmem:[%s271 + $0xf4] sm:$0xf]
        %v350 = vld [vmem:[%s271 + $0xf8] sm:$0xf]
        %v351 = vld [vmem:[%s271 + $0xfc] sm:$0xf]
        %v416 = vunpack.c.l.b16 %v288
        %v417 = vunpack.c.l.b16 %v289
        %v418 = vunpack.c.l.b16 %v290
        %v419 = vunpack.c.l.b16 %v291
        %v420 = vunpack.c.l.b16 %v292
        %v421 = vunpack.c.l.b16 %v293
        %v422 = vunpack.c.l.b16 %v294
        %v423 = vunpack.c.l.b16 %v295
        %v424 = vunpack.c.l.b16 %v296
        %v425 = vunpack.c.l.b16 %v297
        %v426 = vunpack.c.l.b16 %v298
        %v427 = vunpack.c.l.b16 %v299
        %v428 = vunpack.c.l.b16 %v300
        %v429 = vunpack.c.l.b16 %v301
        %v430 = vunpack.c.l.b16 %v302
        %v431 = vunpack.c.l.b16 %v303
        %v432 = vunpack.c.l.b16 %v304
        %v433 = vunpack.c.l.b16 %v305
        %v434 = vunpack.c.l.b16 %v306
        %v435 = vunpack.c.l.b16 %v307
        %v436 = vunpack.c.l.b16 %v308
        %v437 = vunpack.c.l.b16 %v309
        %v438 = vunpack.c.l.b16 %v310
        %v439 = vunpack.c.l.b16 %v311
        %v440 = vunpack.c.l.b16 %v312
        %v441 = vunpack.c.l.b16 %v313
        %v442 = vunpack.c.l.b16 %v314
        %v443 = vunpack.c.l.b16 %v315
        %v444 = vunpack.c.l.b16 %v316
        %v445 = vunpack.c.l.b16 %v317
        %v446 = vunpack.c.l.b16 %v318
        %v447 = vunpack.c.l.b16 %v319
        %v448 = vunpack.c.l.b16 %v320
        %v449 = vunpack.c.l.b16 %v321
        %v450 = vunpack.c.l.b16 %v322
        %v451 = vunpack.c.l.b16 %v323
        %v452 = vunpack.c.l.b16 %v324
        %v453 = vunpack.c.l.b16 %v325
        %v454 = vunpack.c.l.b16 %v326
        %v455 = vunpack.c.l.b16 %v327
        %v456 = vunpack.c.l.b16 %v328
        %v457 = vunpack.c.l.b16 %v329
        %v458 = vunpack.c.l.b16 %v330
        %v459 = vunpack.c.l.b16 %v331
        %v460 = vunpack.c.l.b16 %v332
        %v461 = vunpack.c.l.b16 %v333
        %v462 = vunpack.c.l.b16 %v334
        %v463 = vunpack.c.l.b16 %v335
        %v464 = vunpack.c.l.b16 %v336
        %v465 = vunpack.c.l.b16 %v337
        %v466 = vunpack.c.l.b16 %v338
        %v467 = vunpack.c.l.b16 %v339
        %v468 = vunpack.c.l.b16 %v340
        %v469 = vunpack.c.l.b16 %v341
        %v470 = vunpack.c.l.b16 %v342
        %v471 = vunpack.c.l.b16 %v343
        %v472 = vunpack.c.l.b16 %v344
        %v473 = vunpack.c.l.b16 %v345
        %v474 = vunpack.c.l.b16 %v346
        %v475 = vunpack.c.l.b16 %v347
        %v476 = vunpack.c.l.b16 %v348
        %v477 = vunpack.c.l.b16 %v349
        %v478 = vunpack.c.l.b16 %v350
        %v479 = vunpack.c.l.b16 %v351
        %v480 = vpack.c.b16 %v417, %v416
        %v481 = vpack.c.b16 %v419, %v418
        %v482 = vpack.c.b16 %v421, %v420
        %v483 = vpack.c.b16 %v423, %v422
        %v484 = vpack.c.b16 %v425, %v424
        %v485 = vpack.c.b16 %v427, %v426
        %v486 = vpack.c.b16 %v429, %v428
        %v487 = vpack.c.b16 %v431, %v430
        %v488 = vpack.c.b16 %v433, %v432
        %v489 = vpack.c.b16 %v435, %v434
        %v490 = vpack.c.b16 %v437, %v436
        %v491 = vpack.c.b16 %v439, %v438
        %v492 = vpack.c.b16 %v441, %v440
        %v493 = vpack.c.b16 %v443, %v442
        %v494 = vpack.c.b16 %v445, %v444
        %v495 = vpack.c.b16 %v447, %v446
        %v496 = vpack.c.b16 %v449, %v448
        %v497 = vpack.c.b16 %v451, %v450
        %v498 = vpack.c.b16 %v453, %v452
        %v499 = vpack.c.b16 %v455, %v454
        %v500 = vpack.c.b16 %v457, %v456
        %v501 = vpack.c.b16 %v459, %v458
        %v502 = vpack.c.b16 %v461, %v460
        %v503 = vpack.c.b16 %v463, %v462
        %v504 = vpack.c.b16 %v465, %v464
        %v505 = vpack.c.b16 %v467, %v466
        %v506 = vpack.c.b16 %v469, %v468
        %v507 = vpack.c.b16 %v471, %v470
        %v508 = vpack.c.b16 %v473, %v472
        %v509 = vpack.c.b16 %v475, %v474
        %v510 = vpack.c.b16 %v477, %v476
        %v511 = vpack.c.b16 %v479, %v478
        %544 = vmatprep.subr.bf16.mxu0 0
        %545 = vmatpush1.bf16.msra.mxu0 %v487
        %546 = vmatprep.subr.bf16.mxu0 0
        %547 = vmatpush1.bf16.msra.mxu0 %v486
        %548 = vmatprep.subr.bf16.mxu0 0
        %549 = vmatpush1.bf16.msra.mxu0 %v485
        %550 = vmatprep.subr.bf16.mxu0 0
        %551 = vmatpush1.bf16.msra.mxu0 %v484
        %552 = vmatprep.subr.bf16.mxu0 0
        %553 = vmatpush1.bf16.msra.mxu0 %v483
        %554 = vmatprep.subr.bf16.mxu0 0
        %555 = vmatpush1.bf16.msra.mxu0 %v482
        %556 = vmatprep.subr.bf16.mxu0 0
        %557 = vmatpush1.bf16.msra.mxu0 %v481
        %558 = vmatprep.subr.bf16.mxu0 0
        %559 = vmatpush1.bf16.msra.mxu0 %v480
        %560 = vmatprep.subr.bf16.mxu0 0
        %561 = vmatpush2.bf16.msra.mxu0 %v495
        %562 = vmatprep.subr.bf16.mxu0 0
        %563 = vmatpush2.bf16.msra.mxu0 %v494
        %564 = vmatprep.subr.bf16.mxu0 0
        %565 = vmatpush2.bf16.msra.mxu0 %v493
        %566 = vmatprep.subr.bf16.mxu0 0
        %567 = vmatpush2.bf16.msra.mxu0 %v492
        %568 = vmatprep.subr.bf16.mxu0 0
        %569 = vmatpush2.bf16.msra.mxu0 %v491
        %570 = vmatprep.subr.bf16.mxu0 0
        %571 = vmatpush2.bf16.msra.mxu0 %v490
        %572 = vmatprep.subr.bf16.mxu0 0
        %573 = vmatpush2.bf16.msra.mxu0 %v489
        %574 = vmatprep.subr.bf16.mxu0 0
        %575 = vmatpush2.bf16.msra.mxu0 %v488
        %576 = vmatprep.mubr.bf16.mxu0 %v284
        %577 = vmatmul.mubr.bf16.gmra.mxu0 %v283
        %v578 = vpop.f32.mrf.mxu0
        %v579 = vadd.f32 0.0, %v578
        %v580 = vpop.f32.mrf.mxu0
        %v581 = vpop.f32.mrf.mxu0
        %v582 = vpop.f32.mrf.mxu0
        %583 = vdwg.mxu0
        %584 = vmatprep.subr.bf16.mxu0 0
        %585 = vmatpush1.bf16.msra.mxu0 %v503
        %586 = vmatprep.subr.bf16.mxu0 0
        %587 = vmatpush1.bf16.msra.mxu0 %v502
        %588 = vmatprep.subr.bf16.mxu0 0
        %589 = vmatpush1.bf16.msra.mxu0 %v501
        %590 = vmatprep.subr.bf16.mxu0 0
        %591 = vmatpush1.bf16.msra.mxu0 %v500
        %592 = vmatprep.subr.bf16.mxu0 0
        %593 = vmatpush1.bf16.msra.mxu0 %v499
        %594 = vmatprep.subr.bf16.mxu0 0
        %595 = vmatpush1.bf16.msra.mxu0 %v498
        %596 = vmatprep.subr.bf16.mxu0 0
        %597 = vmatpush1.bf16.msra.mxu0 %v497
        %598 = vmatprep.subr.bf16.mxu0 0
        %599 = vmatpush1.bf16.msra.mxu0 %v496
        %600 = vmatprep.subr.bf16.mxu0 0
        %601 = vmatpush2.bf16.msra.mxu0 %v511
        %602 = vmatprep.subr.bf16.mxu0 0
        %603 = vmatpush2.bf16.msra.mxu0 %v510
        %604 = vmatprep.subr.bf16.mxu0 0
        %605 = vmatpush2.bf16.msra.mxu0 %v509
        %606 = vmatprep.subr.bf16.mxu0 0
        %607 = vmatpush2.bf16.msra.mxu0 %v508
        %608 = vmatprep.subr.bf16.mxu0 0
        %609 = vmatpush2.bf16.msra.mxu0 %v507
        %610 = vmatprep.subr.bf16.mxu0 0
        %611 = vmatpush2.bf16.msra.mxu0 %v506
        %612 = vmatprep.subr.bf16.mxu0 0
        %613 = vmatpush2.bf16.msra.mxu0 %v505
        %614 = vmatprep.subr.bf16.mxu0 0
        %615 = vmatpush2.bf16.msra.mxu0 %v504
        %616 = vmatprep.mubr.bf16.mxu0 %v286
        %617 = vmatmul.mubr.bf16.gmra.mxu0 %v285
        %v618 = vpop.f32.mrf.mxu0
        %v619 = vadd.f32 %v579, %v618
        %v620 = vpop.f32.mrf.mxu0
        %v621 = vpop.f32.mrf.mxu0
        %v622 = vpop.f32.mrf.mxu0
        %623 = vdwg.mxu0
        %v624 = vadd.f32 %v287, %v619
        %625 = vst [vmem:[#allocation2] sm:$0xff] %v624
        %p626 = scmp.eq.s32.totalorder %s24, 1
        // Predicated region
        $region45: #{res_cnn_encoder_forward.1} parent=39 // pred_check
          %p627 = pneg %p626
        $region46: #{res_cnn_encoder_forward.1} parent=39 // pred_check_branch
          %629 = sbr.rel (%p627) target = $region48
        $region47: #{res_cnn_encoder_forward.1} parent=39 // pred_region
          %v630 = vld [vmem:[#allocation2] sm:$0xff]
          %v631 = vld [vmem:[%s2] sm:$0x1]
          %v633 = vlaneseq
          %v634 = vshrl.u32 %v633, 7
          %v635 = vsub.s32 0, %v634
          %v636 = vrot.slane %v631, %v635
          %v638 = vadd.f32 %v630, %v636
          %v639 = vmax.f32 %v638, 0.0
          %v640 = vpack.c.bf16 %v639, %v639
          %v641 = vld [vmem:[%s3] sm:$0xf]
          %v642 = vld [vmem:[%s3 + $0x4] sm:$0xf]
          %v643 = vld [vmem:[%s3 + $0x8] sm:$0xf]
          %v644 = vld [vmem:[%s3 + $0xc] sm:$0xf]
          %v645 = vld [vmem:[%s3 + $0x10] sm:$0xf]
          %v646 = vld [vmem:[%s3 + $0x14] sm:$0xf]
          %v647 = vld [vmem:[%s3 + $0x18] sm:$0xf]
          %v648 = vld [vmem:[%s3 + $0x1c] sm:$0xf]
          %v649 = vld [vmem:[%s3 + $0x20] sm:$0xf]
          %v650 = vld [vmem:[%s3 + $0x24] sm:$0xf]
          %v651 = vld [vmem:[%s3 + $0x28] sm:$0xf]
          %v652 = vld [vmem:[%s3 + $0x2c] sm:$0xf]
          %v653 = vld [vmem:[%s3 + $0x30] sm:$0xf]
          %v654 = vld [vmem:[%s3 + $0x34] sm:$0xf]
          %v655 = vld [vmem:[%s3 + $0x38] sm:$0xf]
          %v656 = vld [vmem:[%s3 + $0x3c] sm:$0xf]
          %v657 = vld [vmem:[%s4] sm:$0x1]
          %v659 = vlaneseq
          %v660 = vshrl.u32 %v659, 7
          %v661 = vsub.s32 0, %v660
          %v662 = vrot.slane %v657, %v661
          %v680 = vunpack.c.l.b16 %v641
          %v681 = vunpack.c.l.b16 %v642
          %v682 = vunpack.c.l.b16 %v643
          %v683 = vunpack.c.l.b16 %v644
          %v684 = vunpack.c.l.b16 %v645
          %v685 = vunpack.c.l.b16 %v646
          %v686 = vunpack.c.l.b16 %v647
          %v687 = vunpack.c.l.b16 %v648
          %v688 = vunpack.c.l.b16 %v649
          %v689 = vunpack.c.l.b16 %v650
          %v690 = vunpack.c.l.b16 %v651
          %v691 = vunpack.c.l.b16 %v652
          %v692 = vunpack.c.l.b16 %v653
          %v693 = vunpack.c.l.b16 %v654
          %v694 = vunpack.c.l.b16 %v655
          %v695 = vunpack.c.l.b16 %v656
          %v696 = vpack.c.b16 %v681, %v680
          %v697 = vpack.c.b16 %v683, %v682
          %v698 = vpack.c.b16 %v685, %v684
          %v699 = vpack.c.b16 %v687, %v686
          %v700 = vpack.c.b16 %v689, %v688
          %v701 = vpack.c.b16 %v691, %v690
          %v702 = vpack.c.b16 %v693, %v692
          %v703 = vpack.c.b16 %v695, %v694
          %712 = vmatprep.subr.bf16.mxu0 0
          %713 = vmatpush1.bf16.msra.mxu0 %v703
          %714 = vmatprep.subr.bf16.mxu0 0
          %715 = vmatpush1.bf16.msra.mxu0 %v702
          %716 = vmatprep.subr.bf16.mxu0 0
          %717 = vmatpush1.bf16.msra.mxu0 %v701
          %718 = vmatprep.subr.bf16.mxu0 0
          %719 = vmatpush1.bf16.msra.mxu0 %v700
          %720 = vmatprep.subr.bf16.mxu0 0
          %721 = vmatpush1.bf16.msra.mxu0 %v699
          %722 = vmatprep.subr.bf16.mxu0 0
          %723 = vmatpush1.bf16.msra.mxu0 %v698
          %724 = vmatprep.subr.bf16.mxu0 0
          %725 = vmatpush1.bf16.msra.mxu0 %v697
          %726 = vmatprep.subr.bf16.mxu0 0
          %727 = vmatpush1.bf16.msra.mxu0 %v696
          %728 = vmatprep.subr.bf16.mxu0 0
          %729 = vmatpush2.bf16.msra.mxu0 0
          %730 = vmatprep.subr.bf16.mxu0 0
          %731 = vmatpush2.bf16.msra.mxu0 0
          %732 = vmatprep.subr.bf16.mxu0 0
          %733 = vmatpush2.bf16.msra.mxu0 0
          %734 = vmatprep.subr.bf16.mxu0 0
          %735 = vmatpush2.bf16.msra.mxu0 0
          %736 = vmatprep.subr.bf16.mxu0 0
          %737 = vmatpush2.bf16.msra.mxu0 0
          %738 = vmatprep.subr.bf16.mxu0 0
          %739 = vmatpush2.bf16.msra.mxu0 0
          %740 = vmatprep.subr.bf16.mxu0 0
          %741 = vmatpush2.bf16.msra.mxu0 0
          %742 = vmatprep.subr.bf16.mxu0 0
          %743 = vmatpush2.bf16.msra.mxu0 0
          %744 = vmatprep.mubr.bf16.mxu0 0
          %745 = vmatmul.mubr.bf16.gmra.mxu0 %v640
          %v746 = vpop.f32.mrf.mxu0
          %v747 = vadd.f32 %v662, %v746
          %v748 = vpop.f32.mrf.mxu0
          %v749 = vpop.f32.mrf.mxu0
          %v750 = vpop.f32.mrf.mxu0
          %751 = vdwg.mxu0
          %752 = vst [vmem:[%s256] sm:$0xff] %v747
        $region48: #{res_cnn_encoder_forward.1} parent=39 // pred_fallthru
          _
        %s753 = sand.u32 %s156, 1
        %s754 = scalar_lea.sflag [#allocation4], %s753
        %s755 = sand.u32 %s156, 1
        %s756 = smul.addr %s755, 8
        %s757 = scalar_lea.vmem [#allocation3], %s756
        // Predicated region
        $region49: #{res_cnn_encoder_forward.1} parent=39 // pred_check
          %p758 = pneg %p166
        $region50: #{res_cnn_encoder_forward.1} parent=39 // pred_check_branch
          %760 = sbr.rel (%p758) target = $region52
        $region51: #{res_cnn_encoder_forward.1} parent=39 // pred_region
          %s762 = ssub.s32 128, 128
          %763 = vsyncadd %s754, %s762
          %s764 = smul.addr %s23, 128
          %s765 = scalar_lea.hbm %s5, %s764
          %s767 = sshll.u32 %s757, 4
          %s768 = int_to_ptr.vmem [resolvable:$true] %s767
          %770 = dma.vmem_to_hbm [thread:$0]  %s768, 128, %s765, %s754
        $region52: #{res_cnn_encoder_forward.1} parent=39 // pred_fallthru
          _
      $region40: #{res_cnn_encoder_forward.1} parent=5 // pred_fallthru
        _
      %p771 = scmp.le.s32.totalorder 2, %s14
      // Predicated region
      $region53: #{res_cnn_encoder_forward.1} parent=5 // pred_check
        %p772 = pneg %p771
      $region54: #{res_cnn_encoder_forward.1} parent=5 // pred_check_branch
        %774 = sbr.rel (%p772) target = $region56
      $region55: #{res_cnn_encoder_forward.1} parent=5 // pred_region
        %s775 = ssub.s32 %s14, 2
        // Predicated region
        $region57: #{res_cnn_encoder_forward.1} parent=55 // pred_check
          %p776 = pneg %p172
        $region58: #{res_cnn_encoder_forward.1} parent=55 // pred_check_branch
          %778 = sbr.rel (%p776) target = $region60
        $region59: #{res_cnn_encoder_forward.1} parent=55 // pred_region
          %s779 = sand.u32 %s157, 1
          %s780 = scalar_lea.sflag [#allocation4], %s779
          %s781 = sand.u32 %s157, 1
          %s782 = smul.addr %s781, 8
          %s783 = scalar_lea.vmem [#allocation3], %s782
          %784 = dma.done %s780, 128
        $region60: #{res_cnn_encoder_forward.1} parent=55 // pred_fallthru
          _
      $region56: #{res_cnn_encoder_forward.1} parent=5 // pred_fallthru
        _
    $region6: #{res_cnn_encoder_forward.1} parent=1 // loop_footer
      %s18 = sadd.s32 1, %s14
    $region7: #{res_cnn_encoder_forward.1} parent=1 // loop_footer_branch
      %13 = sbr.rel target = $region3
    $region8: #{res_cnn_encoder_forward.1} parent=1 // loop_exit
      _
    %785 = vsyncpa [#allocation4], 1
    %s786 = scalar_lea.sflag [#allocation4], 1
    %787 = vsyncpa %s786, 1

</llo_original>
